<compile_context>
chip_gen: v7x
topology: tpu7x:2x2x1
jax: 0.10.0
libtpu: 0.0.40
codegen_flags: <defaults>
</compile_context>

<pallas_src>
import jax
import jax.numpy as jnp
from jax import lax
from jax.experimental import pallas as pl
from jax.experimental.pallas import tpu as pltpu


_H_CHUNK = 512                          # hidden-dim lanes per in-kernel chunk
_STEP_INPUT_BYTES = 4 * 1024 * 1024     # target streamed input bytes per grid step
_VMEM_BUDGET = 30 * 1024 * 1024         # conservative working-set budget (all chips)
_TILE_B_CAP = 8192


def _make_kernel(margin: float, H: int, chunk: int):
    n_chunks = -(-H // chunk)

    def kernel(q_ref, a_ref, n_ref, losses_ref):
        tb = q_ref.shape[0]
        zeros = jnp.zeros((tb, 1), jnp.float32)
        qsq, asq, nsq, qa, qn = zeros, zeros, zeros, zeros, zeros

        # Chunked reduction over the hidden dim: only ~3 chunk-sized f32 casts
        # plus one product are live at a time, independent of H.
        for c in range(n_chunks):
            lo = c * chunk
            hi = min(H, lo + chunk)
            qc = q_ref[:, lo:hi].astype(jnp.float32)
            ac = a_ref[:, lo:hi].astype(jnp.float32)
            nc = n_ref[:, lo:hi].astype(jnp.float32)
            qsq = qsq + jnp.sum(qc * qc, axis=1, keepdims=True)
            asq = asq + jnp.sum(ac * ac, axis=1, keepdims=True)
            nsq = nsq + jnp.sum(nc * nc, axis=1, keepdims=True)
            qa = qa + jnp.sum(qc * ac, axis=1, keepdims=True)
            qn = qn + jnp.sum(qc * nc, axis=1, keepdims=True)

        # cosine sims via per-norm rsqrt (EUP); matches torch's sqrt+div.
        inv_q = lax.rsqrt(qsq)
        inv_a = lax.rsqrt(asq)
        inv_n = lax.rsqrt(nsq)
        qa_sim = qa * inv_q * inv_a
        qn_sim = qn * inv_q * inv_n
        losses_ref[...] = jnp.maximum(
            jnp.float32(0.0), jnp.float32(margin) - (qa_sim - qn_sim))

    return kernel


def _pick_tile_b(B: int, H: int, itemsize: int):
    """Dtype-aware batch tile + estimated VMEM working set."""
    # minimum legal sublane tile for this input dtype (f32:8, bf16:16, i8/fp8:32)
    min_rows = 8 * max(1, 4 // itemsize)
    chunk = min(H, _H_CHUNK)

    def vmem_need(t):
        return (2 * 3 * t * H * itemsize     # double-buffered input blocks
                + 4 * t * chunk * 4          # f32 cast/product chunk temporaries
                + 8 * t * 512)               # lane-padded (t,1) accums + out buffers

    # start from the HBM-streaming target, shrink until it fits the budget
    tile = max(min_rows, _STEP_INPUT_BYTES // (3 * H * itemsize))
    tile = min(tile, _TILE_B_CAP)
    while tile > min_rows and vmem_need(tile) > _VMEM_BUDGET:
        tile //= 2
    tile = max(min_rows, (tile // min_rows) * min_rows)

    b_cap = -(-B // min_rows) * min_rows     # batch rounded up to a legal tile
    # keep >= 2 grid steps when the batch allows it (v7x: 2 TensorCores share
    # the "parallel" grid axis); negligible cost on 1-TC v5e/v6e.
    if B >= 2 * min_rows:
        half = max(min_rows, ((b_cap // 2) // min_rows) * min_rows)
        tile = min(tile, half)
    tile = min(tile, b_cap)
    return tile, vmem_need(tile)


def margin_cosine_reduction_loss(q, a, n, margin: float):
    """Returns (losses[(B,)], total_loss[scalar]) matching the PyTorch module."""
    assert q.shape == a.shape == n.shape and q.ndim == 2
    B, H = q.shape
    itemsize = jnp.dtype(q.dtype).itemsize

    tile_b, vmem_need = _pick_tile_b(B, H, itemsize)
    chunk = min(H, _H_CHUNK)
    grid = (pl.cdiv(B, tile_b),)             # ragged last block; no padding pass
    vmem_limit = int(min(max(vmem_need + (12 << 20), 24 << 20), 42 << 20))

    cost = pl.CostEstimate(
        flops=10 * B * H + 8 * B,
        transcendentals=3 * B,
        bytes_accessed=3 * B * H * itemsize + B * 4,
    )

    losses_2d = pl.pallas_call(
        _make_kernel(float(margin), H, chunk),
        out_shape=jax.ShapeDtypeStruct((B, 1), jnp.float32),
        grid=grid,
        in_specs=[
            pl.BlockSpec((tile_b, H), lambda i: (i, 0)),
            pl.BlockSpec((tile_b, H), lambda i: (i, 0)),
            pl.BlockSpec((tile_b, H), lambda i: (i, 0)),
        ],
        out_specs=pl.BlockSpec((tile_b, 1), lambda i: (i, 0)),
        compiler_params=pltpu.CompilerParams(
            dimension_semantics=("parallel",),
            vmem_limit_bytes=vmem_limit),
        cost_estimate=cost,
    )(q, a, n)

    losses = losses_2d[:, 0]
    total = jnp.sum(losses)   # B floats — negligible; keeps grid axis parallel
    return losses, total


if __name__ == "__main__":
    key = jax.random.PRNGKey(0)
    kq, ka, kn = jax.random.split(key, 3)

    B, H = 8, 32
    margin = 0.5

    # reference in plain JAX, matching the torch module exactly (sqrt + div)
    def ref(q, a, n, m):
        qf, af, nf = (x.astype(jnp.float32) for x in (q, a, n))
        qlen = jnp.sqrt(jnp.sum(qf * qf, 1))
        alen = jnp.sqrt(jnp.sum(af * af, 1))
        nlen = jnp.sqrt(jnp.sum(nf * nf, 1))
        qa = jnp.sum(qf * af, 1) / (qlen * alen)
        qn = jnp.sum(qf * nf, 1) / (qlen * nlen)
        l = jnp.maximum(0.0, m - (qa - qn))
        return l, jnp.sum(l)

    # --- check 1: f32, batch divisible by tile ---
    q = jax.random.normal(kq, (B, H), dtype=jnp.float32)
    a = jax.random.normal(ka, (B, H), dtype=jnp.float32)
    n = jax.random.normal(kn, (B, H), dtype=jnp.float32)
    losses, total = margin_cosine_reduction_loss(q, a, n, margin)
    jax.block_until_ready((losses, total))
    rl, rt = ref(q, a, n, margin)
    assert jnp.allclose(losses, rl, atol=1e-5, rtol=1e-5)
    assert jnp.allclose(total, rt, atol=1e-5, rtol=1e-5)

    # --- check 2: ragged batch (exercises the padded-read / masked-write path) ---
    B2 = 13
    q2 = jax.random.normal(jax.random.PRNGKey(1), (B2, H), dtype=jnp.float32)
    a2 = jax.random.normal(jax.random.PRNGKey(2), (B2, H), dtype=jnp.float32)
    n2 = jax.random.normal(jax.random.PRNGKey(3), (B2, H), dtype=jnp.float32)
    l2, t2 = margin_cosine_reduction_loss(q2, a2, n2, margin)
    jax.block_until_ready((l2, t2))
    rl2, rt2 = ref(q2, a2, n2, margin)
    assert jnp.allclose(l2, rl2, atol=1e-5, rtol=1e-5)
    assert jnp.allclose(t2, rt2, atol=1e-5, rtol=1e-5)

    # --- check 3: bf16 inputs accepted directly (f32 math in-kernel) ---
    q3 = q.astype(jnp.bfloat16)
    a3 = a.astype(jnp.bfloat16)
    n3 = n.astype(jnp.bfloat16)
    l3, t3 = margin_cosine_reduction_loss(q3, a3, n3, margin)
    jax.block_until_ready((l3, t3))
    rl3, rt3 = ref(q3, a3, n3, margin)
    assert jnp.allclose(l3, rl3, atol=1e-5, rtol=1e-5)
    assert jnp.allclose(t3, rt3, atol=1e-5, rtol=1e-5)

    print("KERNEL_OK")
</pallas_src>

<mosaic_0001>
module attributes {stable_mosaic.version = 11 : i64} {
  func.func @kernel(%arg0: i32, %arg1: memref<8x32xf32, #tpu.memory_space<vmem>>, %arg2: memref<8x32xf32, #tpu.memory_space<vmem>>, %arg3: memref<8x32xf32, #tpu.memory_space<vmem>>, %arg4: memref<8x1xf32, #tpu.memory_space<vmem>>) attributes {dimension_semantics = [#tpu.dimension_semantics<parallel>], iteration_bounds = array<i64: 1>, scalar_prefetch = 0 : i64, scratch_operands = 0 : i64, tpu.core_type = #tpu.core_type<tc>, window_params = [{transform_indices = @transform_0, window_bounds = array<i64: 8, 32>}, {transform_indices = @transform_1, window_bounds = array<i64: 8, 32>}, {transform_indices = @transform_2, window_bounds = array<i64: 8, 32>}, {transform_indices = @transform_3, window_bounds = array<i64: 8, 1>}]} {
    %cst = arith.constant 0.000000e+00 : f32
    %0 = vector.broadcast %cst : f32 to vector<8x1xf32>
    %c0 = arith.constant 0 : index
    %c0_0 = arith.constant 0 : index
    %1 = vector.load %arg1[%c0, %c0_0] : memref<8x32xf32, #tpu.memory_space<vmem>>, vector<8x32xf32>
    %c0_1 = arith.constant 0 : index
    %c0_2 = arith.constant 0 : index
    %2 = vector.load %arg2[%c0_1, %c0_2] : memref<8x32xf32, #tpu.memory_space<vmem>>, vector<8x32xf32>
    %c0_3 = arith.constant 0 : index
    %c0_4 = arith.constant 0 : index
    %3 = vector.load %arg3[%c0_3, %c0_4] : memref<8x32xf32, #tpu.memory_space<vmem>>, vector<8x32xf32>
    %4 = arith.mulf %1, %1 : vector<8x32xf32>
    %cst_5 = arith.constant dense<0.000000e+00> : vector<8xf32>
    %5 = vector.multi_reduction <add>, %4, %cst_5 [1] : vector<8x32xf32> to vector<8xf32>
    %6 = vector.shape_cast %5 : vector<8xf32> to vector<8x1xf32>
    %7 = arith.addf %0, %6 : vector<8x1xf32>
    %8 = arith.mulf %2, %2 : vector<8x32xf32>
    %cst_6 = arith.constant dense<0.000000e+00> : vector<8xf32>
    %9 = vector.multi_reduction <add>, %8, %cst_6 [1] : vector<8x32xf32> to vector<8xf32>
    %10 = vector.shape_cast %9 : vector<8xf32> to vector<8x1xf32>
    %11 = arith.addf %0, %10 : vector<8x1xf32>
    %12 = arith.mulf %3, %3 : vector<8x32xf32>
    %cst_7 = arith.constant dense<0.000000e+00> : vector<8xf32>
    %13 = vector.multi_reduction <add>, %12, %cst_7 [1] : vector<8x32xf32> to vector<8xf32>
    %14 = vector.shape_cast %13 : vector<8xf32> to vector<8x1xf32>
    %15 = arith.addf %0, %14 : vector<8x1xf32>
    %16 = arith.mulf %1, %2 : vector<8x32xf32>
    %cst_8 = arith.constant dense<0.000000e+00> : vector<8xf32>
    %17 = vector.multi_reduction <add>, %16, %cst_8 [1] : vector<8x32xf32> to vector<8xf32>
    %18 = vector.shape_cast %17 : vector<8xf32> to vector<8x1xf32>
    %19 = arith.addf %0, %18 : vector<8x1xf32>
    %20 = arith.mulf %1, %3 : vector<8x32xf32>
    %cst_9 = arith.constant dense<0.000000e+00> : vector<8xf32>
    %21 = vector.multi_reduction <add>, %20, %cst_9 [1] : vector<8x32xf32> to vector<8xf32>
    %22 = vector.shape_cast %21 : vector<8xf32> to vector<8x1xf32>
    %23 = arith.addf %0, %22 : vector<8x1xf32>
    %24 = math.rsqrt %7 : vector<8x1xf32>
    %25 = math.rsqrt %11 : vector<8x1xf32>
    %26 = math.rsqrt %15 : vector<8x1xf32>
    %27 = arith.mulf %19, %24 : vector<8x1xf32>
    %28 = arith.mulf %27, %25 : vector<8x1xf32>
    %29 = arith.mulf %23, %24 : vector<8x1xf32>
    %30 = arith.mulf %29, %26 : vector<8x1xf32>
    %31 = arith.subf %28, %30 : vector<8x1xf32>
    %cst_10 = arith.constant 5.000000e-01 : f32
    %32 = vector.broadcast %cst_10 : f32 to vector<8x1xf32>
    %33 = arith.subf %32, %31 : vector<8x1xf32>
    %cst_11 = arith.constant 0.000000e+00 : f32
    %34 = vector.broadcast %cst_11 : f32 to vector<8x1xf32>
    %35 = arith.maximumf %34, %33 : vector<8x1xf32>
    %c0_12 = arith.constant 0 : index
    %c0_13 = arith.constant 0 : index
    %36 = vector.load %arg4[%c0_12, %c0_13] : memref<8x1xf32, #tpu.memory_space<vmem>>, vector<8x1xf32>
    tpu.vector_store %arg4[%c0_12, %c0_13], %35 {strides = array<i32>} : memref<8x1xf32, #tpu.memory_space<vmem>>, vector<8x1xf32>,
    return
  }
  func.func @transform_0(%arg0: i32) -> (i32, i32) {
    %c0_i32 = arith.constant 0 : i32
    %c0_i32_0 = arith.constant 0 : i32
    return %arg0, %c0_i32 : i32, i32
  }
  func.func @transform_1(%arg0: i32) -> (i32, i32) {
    %c0_i32 = arith.constant 0 : i32
    %c0_i32_0 = arith.constant 0 : i32
    return %arg0, %c0_i32 : i32, i32
  }
  func.func @transform_2(%arg0: i32) -> (i32, i32) {
    %c0_i32 = arith.constant 0 : i32
    %c0_i32_0 = arith.constant 0 : i32
    return %arg0, %c0_i32 : i32, i32
  }
  func.func @transform_3(%arg0: i32) -> (i32, i32) {
    %c0_i32 = arith.constant 0 : i32
    %c0_i32_0 = arith.constant 0 : i32
    return %arg0, %c0_i32 : i32, i32
  }
}

</mosaic_0001>

<llo_original>
// kernel: tpu_custom_call.1
$region0: #{tpu_custom_call.1}
  #allocation0 [shape = 'u32[]', space=smem, size = 0x4, offset = 0x4, fixed_abs, tag = 'smem constant byte address 0x4 - core index']
  #allocation1 [shape = 'u32[144,128]{1,0:T(1,128)}', space=vmem, size = 0x12000, scoped, tag = 'internal scratch']
  %s0 = inlined_call_operand.hbm [shape: f32[8,32], index: 0, kind: input, shape index: {}]
  %s1 = inlined_call_operand.hbm [shape: f32[8,32], index: 1, kind: input, shape index: {}]
  %s2 = inlined_call_operand.hbm [shape: f32[8,32], index: 2, kind: input, shape index: {}]
  %s3 = inlined_call_operand.vmem [shape: f32[8,1], index: 3, kind: output, shape index: {}]
  %s4 = sld [smem:[#allocation0]]
  $region34: #{tpu_custom_call.1} parent=0
    _
  %s6 = ssub.s32 1, %s4
  %s7 = scalar_select 0, %s6, %s4
  $region1: #{tpu_custom_call.1} parent=0
    #allocation2 [shape = 'u8[4096]{0}', space=vmem, size = 0x1000, scoped, tag = 'input window, operand 0, single buffered']
    #allocation3 [shape = 's32[1]{0}', space=sflag, size = 0x4, scoped, tag = 'scoped memory for tpu_custom_call.1']
    #allocation4 [shape = 'u8[4096]{0}', space=vmem, size = 0x1000, scoped, tag = 'input window, operand 1, single buffered']
    #allocation5 [shape = 's32[1]{0}', space=sflag, size = 0x4, scoped, tag = 'scoped memory for tpu_custom_call.1']
    #allocation6 [shape = 'u8[4096]{0}', space=vmem, size = 0x1000, scoped, tag = 'input window, operand 2, single buffered']
    %8 = vsyncpa [#allocation3], 0
    %9 = vsyncpa [#allocation5], 0
    // Predicated region
    $region2: #{tpu_custom_call.1} parent=1 // pred_check
      _
    $region3: #{tpu_custom_call.1} parent=1 // pred_check_branch
      %11 = sbr.rel (0) target = $region5
    $region4: #{tpu_custom_call.1} parent=1 // pred_region
      %s13 = ssub.s32 128, 128
      %14 = vsyncadd [#allocation3], %s13
      %s16 = sshll.u32 [#allocation2], 4
      %s17 = int_to_ptr.vmem [resolvable:$true] %s16
      %19 = dma.hbm_to_vmem [thread:$0]  %s0, 128, %s17, [#allocation3]
    $region5: #{tpu_custom_call.1} parent=1 // pred_fallthru
      _
    // Predicated region
    $region6: #{tpu_custom_call.1} parent=1 // pred_check
      _
    $region7: #{tpu_custom_call.1} parent=1 // pred_check_branch
      %21 = sbr.rel (0) target = $region9
    $region8: #{tpu_custom_call.1} parent=1 // pred_region
      %s23 = ssub.s32 128, 128
      %24 = vsyncadd [#allocation5], %s23
      %s26 = sshll.u32 [#allocation4], 4
      %s27 = int_to_ptr.vmem [resolvable:$true] %s26
      %29 = dma.hbm_to_vmem [thread:$0]  %s1, 128, %s27, [#allocation5]
    $region9: #{tpu_custom_call.1} parent=1 // pred_fallthru
      _
    // Predicated region
    $region10: #{tpu_custom_call.1} parent=1 // pred_check
      _
    $region11: #{tpu_custom_call.1} parent=1 // pred_check_branch
      %31 = sbr.rel (0) target = $region13
    $region12: #{tpu_custom_call.1} parent=1 // pred_region
      %s33 = ssub.s32 128, 128
      %34 = vsyncadd [#allocation5], %s33
      %s36 = sshll.u32 [#allocation6], 4
      %s37 = int_to_ptr.vmem [resolvable:$true] %s36
      %39 = dma.hbm_to_vmem [thread:$0]  %s2, 128, %s37, [#allocation5]
    $region13: #{tpu_custom_call.1} parent=1 // pred_fallthru
      _
    // Predicated region
    $region14: #{tpu_custom_call.1} parent=1 // pred_check
      _
    $region15: #{tpu_custom_call.1} parent=1 // pred_check_branch
      %41 = sbr.rel (0) target = $region17
    $region16: #{tpu_custom_call.1} parent=1 // pred_region
      %42 = dma.done [#allocation3], 128
    $region17: #{tpu_custom_call.1} parent=1 // pred_fallthru
      _
    // Predicated region
    $region18: #{tpu_custom_call.1} parent=1 // pred_check
      _
    $region19: #{tpu_custom_call.1} parent=1 // pred_check_branch
      %44 = sbr.rel (0) target = $region21
    $region20: #{tpu_custom_call.1} parent=1 // pred_region
      %45 = dma.done [#allocation5], 128
    $region21: #{tpu_custom_call.1} parent=1 // pred_fallthru
      _
    // Predicated region
    $region22: #{tpu_custom_call.1} parent=1 // pred_check
      _
    $region23: #{tpu_custom_call.1} parent=1 // pred_check_branch
      %47 = sbr.rel (0) target = $region25
    $region24: #{tpu_custom_call.1} parent=1 // pred_region
      %48 = dma.done [#allocation5], 128
    $region25: #{tpu_custom_call.1} parent=1 // pred_fallthru
      _
    %v49 = vld [vmem:[#allocation2] sm:$0xff]
    %v50 = vld [vmem:[#allocation4] sm:$0xff]
    %v51 = vld [vmem:[#allocation6] sm:$0xff]
    %v52 = vmul.f32 %v49, %v49
    %vm53 = vcmask 261120
    %v54 = vsel %vm53, %v52, 0.0
    %55 = vadd.xlane.f32.xlu0 %v54
    %v56 = vpop.xlane.xlu0 %55
    %v57 = vadd.f32 %v56, 0.0
    %v58 = vmul.f32 %v50, %v50
    %v59 = vsel %vm53, %v58, 0.0
    %60 = vadd.xlane.f32.xlu0 %v59
    %v61 = vpop.xlane.xlu0 %60
    %v62 = vadd.f32 %v61, 0.0
    %v63 = vmul.f32 %v51, %v51
    %v64 = vsel %vm53, %v63, 0.0
    %65 = vadd.xlane.f32.xlu0 %v64
    %v66 = vpop.xlane.xlu0 %65
    %v67 = vadd.f32 %v66, 0.0
    %v68 = vmul.f32 %v49, %v50
    %v69 = vsel %vm53, %v68, 0.0
    %70 = vadd.xlane.f32.xlu0 %v69
    %v71 = vpop.xlane.xlu0 %70
    %v72 = vadd.f32 %v71, 0.0
    %v73 = vmul.f32 %v49, %v51
    %v74 = vsel %vm53, %v73, 0.0
    %75 = vadd.xlane.f32.xlu0 %v74
    %v76 = vpop.xlane.xlu0 %75
    %v77 = vadd.f32 %v76, 0.0
    %v78 = vrsqrt.pop %v57
    %v79 = vrsqrt.pop %v62
    %v80 = vrsqrt.pop %v67
    %v81 = vmul.f32 %v72, %v78
    %v82 = vmul.f32 %v81, %v79
    %v83 = vmul.f32 %v77, %v78
    %v84 = vmul.f32 %v83, %v80
    %v85 = vsub.f32 %v82, %v84
    %v86 = vsub.f32 0.5, %v85
    %v87 = vmax.f32 %v86, 0.0
    %vm88 = vcmask 7168
    %89 = vst.msk [vmem:[%s3] sm:$0xff] %vm88, %v87
    // Predicated region
    $region26: #{tpu_custom_call.1} parent=1 // pred_check
      _
    $region27: #{tpu_custom_call.1} parent=1 // pred_check_branch
      %91 = sbr.rel (0) target = $region29
    $region28: #{tpu_custom_call.1} parent=1 // pred_region
      _
    $region29: #{tpu_custom_call.1} parent=1 // pred_fallthru
      _
    // Predicated region
    $region30: #{tpu_custom_call.1} parent=1 // pred_check
      _
    $region31: #{tpu_custom_call.1} parent=1 // pred_check_branch
      %93 = sbr.rel (0) target = $region33
    $region32: #{tpu_custom_call.1} parent=1 // pred_region
      _
    $region33: #{tpu_custom_call.1} parent=1 // pred_fallthru
      _
    %94 = vsyncpa [#allocation3], 1
    %95 = vsyncpa [#allocation5], 1

</llo_original>
